<compile_context>
chip_gen: v7x
topology: tpu7x:2x2x1
jax: 0.10.0
libtpu: 0.0.40
codegen_flags: <defaults>
</compile_context>

<pallas_src>
import functools

import numpy as np
import jax
import jax.numpy as jnp
from jax import lax
from jax.experimental import pallas as pl
from jax.experimental.pallas import tpu as pltpu

_U32_HI = np.uint32(0xFFFF0000)   # high-16 mask (bf16 bits of an f32)
_BF16_ONE = np.uint32(0x3F80)     # bf16(1.0) bit pattern (goes in the low 16)


def _default_sub():
    """Cumsum sub-block width: 256 matches the v6e/v7x 256x256 MXU tile,
    128 matches v5e's 128x128 MXU."""
    try:
        kind = jax.devices()[0].device_kind.lower()
    except Exception:
        return 128
    if any(v in kind for v in ("v2", "v3", "v4", "v5")):
        return 128
    return 256


# -----------------------------------------------------------------------------
# Kernel 1: (C, N)-layout softmax + weighted/ignored CE partial sums +
# packed Lovasz inputs (error in high 16 bits, fg in low 16 bits, inverted).
# -----------------------------------------------------------------------------
def _ce_softmax_kernel(logits_ref, labels_ref, weight_ref,
                       packed_ref, gts_ref, ce_num_ref, ce_den_ref,
                       *, ignore_label):
    logits = logits_ref[...].astype(jnp.float32)              # (C, TN)
    labels = labels_ref[...]                                  # (1, TN) int32
    weight = weight_ref[...]                                  # (C, 1)  f32

    C = logits.shape[0]
    class_ids = lax.broadcasted_iota(jnp.int32, (C, 1), 0)    # (C, 1)
    onehot = (labels == class_ids).astype(jnp.float32)        # (C, TN)
    valid = (labels != ignore_label).astype(jnp.float32)      # (1, TN)

    # numerically stable softmax / logsumexp over the class (sublane) axis
    m = jnp.max(logits, axis=0, keepdims=True)                # (1, TN)
    e = jnp.exp(logits - m)
    s = jnp.sum(e, axis=0, keepdims=True)                     # (1, TN)
    probs = e * pl.reciprocal(s, approx=True)                 # EUP reciprocal
    lse = jnp.log(s) + m                                      # (1, TN)

    # weighted CE with ignore_index (PyTorch: weighted mean over valid points)
    # -> per-tile partial numerator / denominator (reduced in the wrapper)
    target_logit = jnp.sum(onehot * logits, axis=0, keepdims=True)   # (1, TN)
    nll = lse - target_logit
    w_sample = jnp.sum(onehot * weight, axis=0, keepdims=True) * valid
    ce_num_ref[...] = jnp.sum(w_sample * nll, keepdims=True)          # (1, 1)
    ce_den_ref[...] = jnp.sum(w_sample, keepdims=True)                # (1, 1)

    # Lovasz inputs: ignored/padded points are zeroed, which is equivalent to
    # filtering them out (zero errors sort last and contribute nothing).
    fg = onehot * valid                                       # (C, TN) in {0,1}
    errors = jnp.abs(fg - probs) * valid                      # (C, TN) >= 0
    gts_ref[...] = jnp.sum(fg, axis=1, keepdims=True)         # (C, 1) partial

    # Pack: bf16(error) bits in the high half (non-negative -> order-preserving
    # as uint32), bf16(fg) bits in the low half; bit-invert so an ASCENDING
    # uint32 sort of this key equals a DESCENDING sort of the errors.
    err_bits = pltpu.bitcast(errors, jnp.uint32) & _U32_HI
    fg_bits = jnp.where(fg > 0.5, _BF16_ONE, np.uint32(0))
    packed_ref[...] = ~(err_bits | fg_bits)


# -----------------------------------------------------------------------------
# Kernel 2: Lovasz-softmax from the per-class sorted packed keys.
# Blocked cumsum: in-kernel bf16 upper-tri constant + register-carried (C,1)
# cumsum/jaccard carries across sub-blocks (fori_loop) and across grid steps
# (VMEM scratch, read/written once per step) -> O(N) work, O(1) VMEM.
# -----------------------------------------------------------------------------
def _lovasz_kernel(packed_ref, gts_ref, loss_ref,
                   tri_ref, carry_cs_ref, carry_jac_ref, pc_acc_ref, *, sub):
    pid = pl.program_id(0)
    C, TN = packed_ref.shape

    @pl.when(pid == 0)
    def _init():
        # tri[j, i] = 1 iff j <= i, so fg @ tri is an in-block inclusive cumsum.
        row = lax.broadcasted_iota(jnp.int32, (sub, sub), 0)
        col = lax.broadcasted_iota(jnp.int32, (sub, sub), 1)
        tri_ref[...] = (row <= col).astype(jnp.bfloat16)
        carry_cs_ref[...] = jnp.zeros_like(carry_cs_ref)
        carry_jac_ref[...] = jnp.zeros_like(carry_jac_ref)
        pc_acc_ref[...] = jnp.zeros_like(pc_acc_ref)
        loss_ref[...] = jnp.zeros_like(loss_ref)

    gts = gts_ref[...]                                        # (C, 1) f32
    tri = tri_ref[...]                                        # (sub, sub) bf16
    base = pid * TN
    pos_local = lax.broadcasted_iota(jnp.float32, (1, sub), 1) + 1.0
    colidx = lax.broadcasted_iota(jnp.int32, (1, sub), 1)

    def body(k, carry):
        carry_cs, carry_jac, pc = carry
        start = k * sub
        off = pl.multiple_of(start, sub)
        packed = ~packed_ref[:, pl.ds(off, sub)]              # un-invert the key
        err = pltpu.bitcast(packed & _U32_HI, jnp.float32)    # bf16-valued error
        fg_bf = pltpu.bitcast(packed << 16, jnp.float32).astype(jnp.bfloat16)

        # in-block inclusive cumsum via bf16 tri matmul (exact: 0/1 inputs,
        # partial sums <= sub, f32 accumulation) + running carry
        cs = jnp.dot(fg_bf, tri, preferred_element_type=jnp.float32) + carry_cs
        pos = pos_local + (base + start).astype(jnp.float32)  # 1-based position
        cs_not = pos - cs                                     # cumsum(1 - fg)
        intersection = gts - cs
        union = gts + cs_not                                  # >= 1 everywhere
        jaccard = 1.0 - intersection / union                  # (C, sub)

        # lovasz_grad: grad[i] = jaccard[i] - jaccard[i-1]; carried across blocks
        jac_prev = pltpu.roll(jaccard, shift=1, axis=1)
        grad = jaccard - jnp.where(colidx == 0, carry_jac, jac_prev)

        pc = pc + jnp.sum(err * grad, axis=1, keepdims=True)
        return cs[:, sub - 1:sub], jaccard[:, sub - 1:sub], pc

    carry_cs, carry_jac, pc = lax.fori_loop(
        0, TN // sub, body,
        (carry_cs_ref[...], carry_jac_ref[...], pc_acc_ref[...]),
        unroll=2)
    carry_cs_ref[...] = carry_cs
    carry_jac_ref[...] = carry_jac
    pc_acc_ref[...] = pc

    @pl.when(pid == pl.num_programs(0) - 1)
    def _finalize():
        present = (gts > 0.0).astype(jnp.float32)             # classes='present'
        num = jnp.sum(pc * present, keepdims=True)
        den = jnp.maximum(jnp.sum(present, keepdims=True), 1.0)
        loss_ref[...] = num / den


# -----------------------------------------------------------------------------
# Wrappers
# -----------------------------------------------------------------------------
def _ce_kernel_call(logits_cn, labels2d, weight, ignore_label, tile_n):
    C, Np = logits_cn.shape
    num_tiles = Np // tile_n
    return pl.pallas_call(
        functools.partial(_ce_softmax_kernel, ignore_label=ignore_label),
        grid=(num_tiles,),
        in_specs=[
            pl.BlockSpec((C, tile_n), lambda i: (0, i)),
            pl.BlockSpec((1, tile_n), lambda i: (0, i)),
            pl.BlockSpec((C, 1), lambda i: (0, 0)),
        ],
        out_specs=(
            pl.BlockSpec((C, tile_n), lambda i: (0, i)),
            pl.BlockSpec((None, C, 1), lambda i: (i, 0, 0)),
            pl.BlockSpec((None, 1, 1), lambda i: (i, 0, 0)),
            pl.BlockSpec((None, 1, 1), lambda i: (i, 0, 0)),
        ),
        out_shape=(
            jax.ShapeDtypeStruct((C, Np), jnp.uint32),             # packed keys
            jax.ShapeDtypeStruct((num_tiles, C, 1), jnp.float32),  # gts partials
            jax.ShapeDtypeStruct((num_tiles, 1, 1), jnp.float32),  # ce numerator
            jax.ShapeDtypeStruct((num_tiles, 1, 1), jnp.float32),  # ce denominator
        ),
        compiler_params=pltpu.CompilerParams(
            dimension_semantics=("parallel",),
            vmem_limit_bytes=32 * 1024 * 1024),
    )(logits_cn, labels2d, weight)


def _lovasz_kernel_call(packed_sorted, gts, tile_n, sub):
    C, Np = packed_sorted.shape
    return pl.pallas_call(
        functools.partial(_lovasz_kernel, sub=sub),
        grid=(Np // tile_n,),
        in_specs=[
            pl.BlockSpec((C, tile_n), lambda i: (0, i)),
            pl.BlockSpec((C, 1), lambda i: (0, 0)),
        ],
        out_specs=pl.BlockSpec((1, 1), lambda i: (0, 0)),
        out_shape=jax.ShapeDtypeStruct((1, 1), jnp.float32),
        scratch_shapes=[
            pltpu.VMEM((sub, sub), jnp.bfloat16),  # in-kernel tri constant
            pltpu.VMEM((C, 1), jnp.float32),       # running cumsum carry
            pltpu.VMEM((C, 1), jnp.float32),       # previous-jaccard carry
            pltpu.VMEM((C, 1), jnp.float32),       # per-class loss accumulator
        ],
        compiler_params=pltpu.CompilerParams(
            dimension_semantics=("arbitrary",),    # serial carry chain
            vmem_limit_bytes=32 * 1024 * 1024),
    )(packed_sorted, gts)


def get_loss_forward(data_dict, class_weights, ignore_label,
                     tile_n_ce=16384, tile_n_lovasz=8192, sub=None):
    if sub is None:
        sub = _default_sub()
    assert tile_n_ce % 128 == 0 and tile_n_lovasz % sub == 0

    logits = data_dict['sparse_logits'].astype(jnp.float32)   # (N, C)
    labels = data_dict['sparse_label'].astype(jnp.int32)      # (N,)
    N, C = logits.shape
    # TODO(synk): f32 position/cumsum math is exact only up to 2^24 points.

    # Pad the point axis so both kernels' grids divide evenly; padded points
    # carry the ignore label so they contribute nothing to CE or Lovasz.
    pad_mult = int(np.lcm(tile_n_ce, tile_n_lovasz))
    Np = ((N + pad_mult - 1) // pad_mult) * pad_mult
    n_pad = Np - N

    logits_cn = logits.T                                      # (C, N) lane-dense
    if n_pad:
        logits_cn = jnp.pad(logits_cn, ((0, 0), (0, n_pad)))
        labels = jnp.pad(labels, (0, n_pad), constant_values=ignore_label)
    labels2d = labels.reshape(1, Np)
    weight = class_weights.reshape(C, 1).astype(jnp.float32)

    packed_inv, gts_part, ce_num_part, ce_den_part = _ce_kernel_call(
        logits_cn, labels2d, weight, ignore_label, tile_n_ce)
    gts = jnp.sum(gts_part, axis=0)                           # (C, 1)
    seg_loss = jnp.sum(ce_num_part) / jnp.sum(ce_den_part)

    # Per-class descending sort of errors; fg rides in the low 16 bits of the
    # same uint32 key so a single ascending sort of the inverted key suffices.
    # TODO(synk): torch.sort-style per-row sort has no clean Pallas TPU
    # equivalent; done with XLA's lax.sort as glue between the two kernels.
    packed_sorted = lax.sort(packed_inv, dimension=1)

    lovasz_loss = _lovasz_kernel_call(packed_sorted, gts, tile_n_lovasz, sub)[0, 0]
    total_loss = lovasz_loss + seg_loss

    out = dict(data_dict)
    out['loss'] = total_loss
    out['loss_sparse'] = total_loss
    out['loss_main_ce'] = seg_loss
    out['loss_main_lovasz'] = lovasz_loss
    return out


# -----------------------------------------------------------------------------
# Pure-numpy reference (float64) of the PyTorch module, for a loose check.
# -----------------------------------------------------------------------------
def _reference_losses_np(logits, labels, class_weights, ignore_label):
    logits = np.asarray(logits, dtype=np.float64)
    labels = np.asarray(labels)
    w = np.asarray(class_weights, dtype=np.float64)
    N, C = logits.shape
    valid = labels != ignore_label
    m = logits.max(axis=1, keepdims=True)
    e = np.exp(logits - m)
    probs = e / e.sum(axis=1, keepdims=True)
    lse = np.log(e.sum(axis=1)) + m[:, 0]
    lv = labels[valid]
    nll = lse[valid] - logits[valid, lv]
    ce = float((w[lv] * nll).sum() / w[lv].sum())
    pv = probs[valid]
    losses = []
    for c in range(C):
        fg = (lv == c).astype(np.float64)
        if fg.sum() == 0:           # classes='present'
            continue
        errors = np.abs(fg - pv[:, c])
        order = np.argsort(-errors, kind='stable')
        e_s, fg_s = errors[order], fg[order]
        g = fg_s.sum()
        inter = g - np.cumsum(fg_s)
        union = g + np.cumsum(1.0 - fg_s)
        jac = 1.0 - inter / union
        grad = np.concatenate([jac[:1], jac[1:] - jac[:-1]])
        losses.append(float((e_s * grad).sum()))
    lovasz = float(np.mean(losses)) if losses else 0.0
    return ce, lovasz


if __name__ == "__main__":
    # Small, deterministic synthetic problem: N points, C classes.
    N, C = 600, 8
    ignore_label = 0

    # config['dataset_params']['seg_labelweights'] -> class weights
    seg_num_per_class = np.array(
        [55437630, 320797, 541736, 2578735, 3274484, 552662, 184064, 78858],
        dtype=np.float64)
    seg_labelweights = seg_num_per_class / np.sum(seg_num_per_class)
    class_weights = np.power(np.amax(seg_labelweights) / seg_labelweights,
                             1.0 / 3.0).astype(np.float32)

    key = jax.random.PRNGKey(0)
    k1, k2 = jax.random.split(key)
    sparse_logits = 2.0 * jax.random.normal(k1, (N, C), dtype=jnp.float32)
    sparse_label = jax.random.randint(k2, (N,), 0, C, dtype=jnp.int32)

    data_dict = {'sparse_logits': sparse_logits, 'sparse_label': sparse_label}
    # Small tiles so the multi-tile (grid > 1) paths of both kernels are hit.
    result = get_loss_forward(data_dict, jnp.asarray(class_weights),
                              ignore_label, tile_n_ce=512, tile_n_lovasz=512)
    jax.block_until_ready(result['loss'])
    assert bool(jnp.isfinite(result['loss']))

    # Loose tolerance: approx reciprocal (~1e-3 rel on probs) and bf16
    # truncation of the sort keys (~0.4% rel on the Lovasz term) are expected.
    ce_ref, lov_ref = _reference_losses_np(np.asarray(sparse_logits),
                                           np.asarray(sparse_label),
                                           class_weights, ignore_label)
    ce_k = float(result['loss_main_ce'])
    lov_k = float(result['loss_main_lovasz'])
    assert abs(ce_k - ce_ref) <= 1e-3 + 1e-3 * abs(ce_ref), (ce_k, ce_ref)
    assert abs(lov_k - lov_ref) <= 2e-2 + 2e-2 * abs(lov_ref), (lov_k, lov_ref)
    print("KERNEL_OK")
</pallas_src>

<mosaic_0001>
module attributes {stable_mosaic.version = 11 : i64} {
  func.func @_ce_softmax_kernel(%arg0: i32, %arg1: memref<8x512xf32, #tpu.memory_space<vmem>>, %arg2: memref<1x512xi32, #tpu.memory_space<vmem>>, %arg3: memref<8x1xf32, #tpu.memory_space<vmem>>, %arg4: memref<8x512xi32, #tpu.memory_space<vmem>>, %arg5: memref<1x8x1xf32, #tpu.memory_space<vmem>>, %arg6: memref<1x1x1xf32, #tpu.memory_space<vmem>>, %arg7: memref<1x1x1xf32, #tpu.memory_space<vmem>>) attributes {dimension_semantics = [#tpu.dimension_semantics<parallel>], iteration_bounds = array<i64: 2>, scalar_prefetch = 0 : i64, scratch_operands = 0 : i64, tpu.core_type = #tpu.core_type<tc>, window_params = [{transform_indices = @transform_0, window_bounds = array<i64: 8, 512>}, {transform_indices = @transform_1, window_bounds = array<i64: 1, 512>}, {pipeline_mode = #tpu.pipeline_mode<synchronous>, transform_indices = @transform_2, window_bounds = array<i64: 8, 1>}, {transform_indices = @transform_3, window_bounds = array<i64: 8, 512>}, {transform_indices = @transform_4, window_bounds = array<i64: 1, 8, 1>}, {transform_indices = @transform_5, window_bounds = array<i64: 1, 1, 1>}, {transform_indices = @transform_6, window_bounds = array<i64: 1, 1, 1>}]} {
    %c0 = arith.constant 0 : index
    %c0_0 = arith.constant 0 : index
    %0 = vector.load %arg1[%c0, %c0_0] : memref<8x512xf32, #tpu.memory_space<vmem>>, vector<8x512xf32>
    %c0_1 = arith.constant 0 : index
    %c0_2 = arith.constant 0 : index
    %1 = vector.load %arg2[%c0_1, %c0_2] : memref<1x512xi32, #tpu.memory_space<vmem>>, vector<1x512xi32>
    %c0_3 = arith.constant 0 : index
    %c0_4 = arith.constant 0 : index
    %2 = vector.load %arg3[%c0_3, %c0_4] : memref<8x1xf32, #tpu.memory_space<vmem>>, vector<8x1xf32>
    %3 = tpu.iota {dimensions = array<i32: 0>} : vector<8x1xi32>
    %4 = vector.broadcast %1 : vector<1x512xi32> to vector<8x512xi32>
    %5 = vector.broadcast %3 : vector<8x1xi32> to vector<8x512xi32>
    %6 = arith.cmpi eq, %4, %5 : vector<8x512xi32>
    %7 = arith.extui %6 : vector<8x512xi1> to vector<8x512xi32>
    %8 = arith.sitofp %7 : vector<8x512xi32> to vector<8x512xf32>
    %c0_i32 = arith.constant 0 : i32
    %9 = vector.broadcast %c0_i32 : i32 to vector<1x512xi32>
    %10 = arith.cmpi ne, %1, %9 : vector<1x512xi32>
    %11 = arith.extui %10 : vector<1x512xi1> to vector<1x512xi32>
    %12 = arith.sitofp %11 : vector<1x512xi32> to vector<1x512xf32>
    %cst = arith.constant dense<0xFF800000> : vector<512xf32>
    %13 = vector.multi_reduction <maximumf>, %0, %cst [0] : vector<8x512xf32> to vector<512xf32>
    %14 = vector.shape_cast %13 : vector<512xf32> to vector<1x512xf32>
    %15 = vector.broadcast %14 : vector<1x512xf32> to vector<8x512xf32>
    %16 = arith.subf %0, %15 : vector<8x512xf32>
    %17 = math.exp %16 : vector<8x512xf32>
    %cst_5 = arith.constant dense<0.000000e+00> : vector<512xf32>
    %18 = vector.multi_reduction <add>, %17, %cst_5 [0] : vector<8x512xf32> to vector<512xf32>
    %19 = vector.shape_cast %18 : vector<512xf32> to vector<1x512xf32>
    %20 = tpu.reciprocal %19 {approx = true} : vector<1x512xf32> -> vector<1x512xf32>
    %21 = vector.broadcast %20 : vector<1x512xf32> to vector<8x512xf32>
    %22 = arith.mulf %17, %21 : vector<8x512xf32>
    %23 = math.log %19 : vector<1x512xf32>
    %24 = arith.addf %23, %14 : vector<1x512xf32>
    %25 = arith.mulf %8, %0 : vector<8x512xf32>
    %cst_6 = arith.constant dense<0.000000e+00> : vector<512xf32>
    %26 = vector.multi_reduction <add>, %25, %cst_6 [0] : vector<8x512xf32> to vector<512xf32>
    %27 = vector.shape_cast %26 : vector<512xf32> to vector<1x512xf32>
    %28 = arith.subf %24, %27 : vector<1x512xf32>
    %29 = vector.broadcast %2 : vector<8x1xf32> to vector<8x512xf32>
    %30 = arith.mulf %8, %29 : vector<8x512xf32>
    %cst_7 = arith.constant dense<0.000000e+00> : vector<512xf32>
    %31 = vector.multi_reduction <add>, %30, %cst_7 [0] : vector<8x512xf32> to vector<512xf32>
    %32 = vector.shape_cast %31 : vector<512xf32> to vector<1x512xf32>
    %33 = arith.mulf %32, %12 : vector<1x512xf32>
    %34 = arith.mulf %33, %28 : vector<1x512xf32>
    %35 = vector.shape_cast %34 : vector<1x512xf32> to vector<1x1x512xf32>
    %cst_8 = arith.constant dense<0.000000e+00> : vector<1xf32>
    %36 = vector.multi_reduction <add>, %35, %cst_8 [1, 2] : vector<1x1x512xf32> to vector<1xf32>
    %37 = vector.shape_cast %36 : vector<1xf32> to vector<1x1x1xf32>
    %38 = vector.extract %37[0, 0, 0] : f32 from vector<1x1x1xf32>
    %39 = vector.broadcast %38 : f32 to vector<1x1xf32>
    %c0_9 = arith.constant 0 : index
    %c0_10 = arith.constant 0 : index
    %c0_11 = arith.constant 0 : index
    %40 = vector.load %arg6[%c0_9, %c0_10, %c0_11] : memref<1x1x1xf32, #tpu.memory_space<vmem>>, vector<1x1x1xf32>
    %41 = vector.shape_cast %40 : vector<1x1x1xf32> to vector<1x1xf32>
    %42 = vector.shape_cast %39 : vector<1x1xf32> to vector<1x1x1xf32>
    tpu.vector_store %arg6[%c0_9, %c0_10, %c0_11], %42 {strides = array<i32>} : memref<1x1x1xf32, #tpu.memory_space<vmem>>, vector<1x1x1xf32>,
    %43 = vector.shape_cast %33 : vector<1x512xf32> to vector<1x1x512xf32>
    %cst_12 = arith.constant dense<0.000000e+00> : vector<1xf32>
    %44 = vector.multi_reduction <add>, %43, %cst_12 [1, 2] : vector<1x1x512xf32> to vector<1xf32>
    %45 = vector.shape_cast %44 : vector<1xf32> to vector<1x1x1xf32>
    %46 = vector.extract %45[0, 0, 0] : f32 from vector<1x1x1xf32>
    %47 = vector.broadcast %46 : f32 to vector<1x1xf32>
    %c0_13 = arith.constant 0 : index
    %c0_14 = arith.constant 0 : index
    %c0_15 = arith.constant 0 : index
    %48 = vector.load %arg7[%c0_13, %c0_14, %c0_15] : memref<1x1x1xf32, #tpu.memory_space<vmem>>, vector<1x1x1xf32>
    %49 = vector.shape_cast %48 : vector<1x1x1xf32> to vector<1x1xf32>
    %50 = vector.shape_cast %47 : vector<1x1xf32> to vector<1x1x1xf32>
    tpu.vector_store %arg7[%c0_13, %c0_14, %c0_15], %50 {strides = array<i32>} : memref<1x1x1xf32, #tpu.memory_space<vmem>>, vector<1x1x1xf32>,
    %51 = vector.broadcast %12 : vector<1x512xf32> to vector<8x512xf32>
    %52 = arith.mulf %8, %51 : vector<8x512xf32>
    %53 = arith.subf %52, %22 : vector<8x512xf32>
    %54 = math.absf %53 : vector<8x512xf32>
    %55 = vector.broadcast %12 : vector<1x512xf32> to vector<8x512xf32>
    %56 = arith.mulf %54, %55 : vector<8x512xf32>
    %cst_16 = arith.constant dense<0.000000e+00> : vector<8xf32>
    %57 = vector.multi_reduction <add>, %52, %cst_16 [1] : vector<8x512xf32> to vector<8xf32>
    %58 = vector.shape_cast %57 : vector<8xf32> to vector<8x1xf32>
    %c0_17 = arith.constant 0 : index
    %c0_18 = arith.constant 0 : index
    %c0_19 = arith.constant 0 : index
    %59 = vector.load %arg5[%c0_17, %c0_18, %c0_19] : memref<1x8x1xf32, #tpu.memory_space<vmem>>, vector<1x8x1xf32>
    %60 = vector.shape_cast %59 : vector<1x8x1xf32> to vector<8x1xf32>
    %61 = vector.shape_cast %58 : vector<8x1xf32> to vector<1x8x1xf32>
    tpu.vector_store %arg5[%c0_17, %c0_18, %c0_19], %61 {strides = array<i32>} : memref<1x8x1xf32, #tpu.memory_space<vmem>>, vector<1x8x1xf32>,
    %62 = tpu.bitcast %56 : vector<8x512xf32> -> vector<8x512xi32>
    %c-65536_i32 = arith.constant -65536 : i32
    %63 = vector.broadcast %c-65536_i32 : i32 to vector<8x512xi32>
    %64 = arith.andi %62, %63 : vector<8x512xi32>
    %cst_20 = arith.constant 5.000000e-01 : f32
    %65 = vector.broadcast %cst_20 : f32 to vector<8x512xf32>
    %66 = arith.cmpf ogt, %52, %65 : vector<8x512xf32>
    %c16256_i32 = arith.constant 16256 : i32
    %c0_i32_21 = arith.constant 0 : i32
    %67 = vector.broadcast %c16256_i32 : i32 to vector<8x512xi32>
    %68 = vector.broadcast %c0_i32_21 : i32 to vector<8x512xi32>
    %69 = arith.select %66, %67, %68 : vector<8x512xi1>, vector<8x512xi32>
    %70 = arith.ori %64, %69 : vector<8x512xi32>
    %cst_22 = arith.constant dense<-1> : vector<8x512xi32>
    %71 = arith.xori %70, %cst_22 : vector<8x512xi32>
    %c0_23 = arith.constant 0 : index
    %c0_24 = arith.constant 0 : index
    %72 = vector.load %arg4[%c0_23, %c0_24] : memref<8x512xi32, #tpu.memory_space<vmem>>, vector<8x512xi32>
    tpu.vector_store %arg4[%c0_23, %c0_24], %71 {strides = array<i32>} : memref<8x512xi32, #tpu.memory_space<vmem>>, vector<8x512xi32>,
    return
  }
  func.func @transform_0(%arg0: i32) -> (i32, i32) {
    %c0_i32 = arith.constant 0 : i32
    %c0_i32_0 = arith.constant 0 : i32
    return %c0_i32, %arg0 : i32, i32
  }
  func.func @transform_1(%arg0: i32) -> (i32, i32) {
    %c0_i32 = arith.constant 0 : i32
    %c0_i32_0 = arith.constant 0 : i32
    return %c0_i32, %arg0 : i32, i32
  }
  func.func @transform_2(%arg0: i32) -> (i32, i32) {
    %c0_i32 = arith.constant 0 : i32
    %c0_i32_0 = arith.constant 0 : i32
    %c0_i32_1 = arith.constant 0 : i32
    return %c0_i32, %c0_i32_0 : i32, i32
  }
  func.func @transform_3(%arg0: i32) -> (i32, i32) {
    %c0_i32 = arith.constant 0 : i32
    %c0_i32_0 = arith.constant 0 : i32
    return %c0_i32, %arg0 : i32, i32
  }
  func.func @transform_4(%arg0: i32) -> (i32, i32, i32) {
    %c0_i32 = arith.constant 0 : i32
    %c0_i32_0 = arith.constant 0 : i32
    %c0_i32_1 = arith.constant 0 : i32
    return %arg0, %c0_i32, %c0_i32_0 : i32, i32, i32
  }
  func.func @transform_5(%arg0: i32) -> (i32, i32, i32) {
    %c0_i32 = arith.constant 0 : i32
    %c0_i32_0 = arith.constant 0 : i32
    %c0_i32_1 = arith.constant 0 : i32
    return %arg0, %c0_i32, %c0_i32_0 : i32, i32, i32
  }
  func.func @transform_6(%arg0: i32) -> (i32, i32, i32) {
    %c0_i32 = arith.constant 0 : i32
    %c0_i32_0 = arith.constant 0 : i32
    %c0_i32_1 = arith.constant 0 : i32
    return %arg0, %c0_i32, %c0_i32_0 : i32, i32, i32
  }
}

</mosaic_0001>

<llo_original>
// kernel: tpu_custom_call.1
$region0: #{tpu_custom_call.1}
  #allocation0 [shape = 'u32[]', space=smem, size = 0x4, offset = 0x4, fixed_abs, tag = 'smem constant byte address 0x4 - core index']
  #allocation1 [shape = 'u32[144,128]{1,0:T(1,128)}', space=vmem, size = 0x12000, scoped, tag = 'internal scratch']
  %s0 = inlined_call_operand.hbm [shape: f32[8,1024], index: 0, kind: input, shape index: {}]
  %s1 = inlined_call_operand.vmem [shape: s32[1,1024], index: 1, kind: input, shape index: {}]
  %s2 = inlined_call_operand.vmem [shape: f32[8,1], index: 2, kind: input, shape index: {}]
  %s3 = inlined_call_operand.hbm [shape: u32[8,1024], index: 3, kind: output, shape index: {0}]
  %s4 = inlined_call_operand.vmem [shape: f32[2,8,1], index: 4, kind: output, shape index: {1}]
  %s5 = inlined_call_operand.vmem [shape: f32[2,1,1], index: 5, kind: output, shape index: {2}]
  %s6 = inlined_call_operand.vmem [shape: f32[2,1,1], index: 6, kind: output, shape index: {3}]
  %7 = xla_tuple %s3, %s4, %s5, %s6
  %s8 = sld [smem:[#allocation0]]
  $region73: #{tpu_custom_call.1} parent=0
    _
  %s10 = ssub.s32 1, %s8
  %s11 = scalar_select 0, %s10, %s8
  $region1: #{tpu_custom_call.1} parent=0
    #allocation2 [shape = 'u8[32768]{0}', space=vmem, size = 0x8000, scoped, tag = 'input window, operand 0']
    #allocation3 [shape = 's32[2]{0}', space=sflag, size = 0x8, scoped, tag = 'scoped memory for tpu_custom_call.1']
    #allocation4 [shape = 's32[2]{0}', space=sflag, size = 0x8, scoped, tag = 'scoped memory for tpu_custom_call.1']
    #allocation5 [shape = 'u8[32768]{0}', space=vmem, size = 0x8000, scoped, tag = 'output window, operand 0']
    %12 = vsyncpa [#allocation3], 0
    %s13 = scalar_lea.sflag [#allocation3], 1
    %14 = vsyncpa %s13, 0
    %15 = vsyncpa [#allocation4], 0
    %s16 = scalar_lea.sflag [#allocation4], 1
    %17 = vsyncpa %s16, 0
    loop: start=0, step=1, limit=4
    $region2: #{tpu_custom_call.1} parent=1 // loop_pre_header
      _
    $region3: #{tpu_custom_call.1} parent=1 // loop_header
      %s19 = sphi 0, %s23
      %p20 = scmp.ge.s32.totalorder %s19, 4
      %s29 = sphi 0, %s31
      %s32 = sphi 0, %s29
      %s33 = sphi 0, %s32
      %s49 = sphi 0, %s33
      %s55 = sphi 0, %s57
      %s58 = sphi 0, %s55
      %s59 = sphi 0, %s58
      %s75 = sphi 0, %s59
      %s79 = sphi 0, %s79
      %s81 = sphi 0, %s79
      %s82 = sphi 0, %s81
      %s96 = sphi 0, %s82
      %s102 = sphi 0, %s104
      %s105 = sphi 0, %s102
      %s106 = sphi 0, %s105
      %s122 = sphi 0, %s106
      %s128 = sphi 0, %s130
      %s131 = sphi 0, %s128
      %s132 = sphi 0, %s131
      %s148 = sphi 0, %s132
      %s154 = sphi 0, %s156
      %s157 = sphi 0, %s154
      %s158 = sphi 0, %s157
      %s174 = sphi 0, %s158
      %s180 = sphi 0, %s182
      %s183 = sphi 0, %s180
      %s184 = sphi 0, %s183
      %s200 = sphi 0, %s184
    $region4: #{tpu_custom_call.1} parent=1 // loop_header_branch
      %22 = sbr.rel (%p20) target = $region8
    $region5: #{tpu_custom_call.1} parent=1 // loop_body
      %s24 = ssub.s32 %s19, 1
      %s25 = ssub.s32 %s19, 2
      %s26 = sadd.s32 %s19, 1
      %s27 = ssub.s32 %s19, %s26
      %p28 = scmp.eq.s32.totalorder %s27, 0
      %s30 = sadd.s32 %s29, 1
      %s31 = scalar_select %p28, %s29, %s30
      %p34 = pneg %p28
      %p35 = scmp.eq.s32.totalorder %s19, 1
      %p36 = por %p34, %p35
      %p37 = scmp.ne.s32.totalorder %s29, %s32
      %p38 = scmp.eq.s32.totalorder %s19, 0
      %p39 = por %p37, %p38
      %p40 = scmp.ne.s32.totalorder %s29, %s32
      %p41 = scmp.eq.s32.totalorder %s24, 1
      %p42 = por %p40, %p41
      %p43 = scmp.ne.s32.totalorder %s32, %s33
      %p44 = scmp.eq.s32.totalorder %s24, 0
      %p45 = por %p43, %p44
      %p46 = scmp.ne.s32.totalorder %s32, %s33
      %p47 = scmp.eq.s32.totalorder %s25, 1
      %p48 = por %p46, %p47
      %p50 = scmp.ne.s32.totalorder %s33, %s49
      %p51 = scmp.eq.s32.totalorder %s25, 0
      %p52 = por %p50, %p51
      %s53 = ssub.s32 %s19, %s26
      %p54 = scmp.eq.s32.totalorder %s53, 0
      %s56 = sadd.s32 %s55, 1
      %s57 = scalar_select %p54, %s55, %s56
      %p60 = pneg %p54
      %p61 = scmp.eq.s32.totalorder %s19, 1
      %p62 = por %p60, %p61
      %p63 = scmp.ne.s32.totalorder %s55, %s58
      %p64 = scmp.eq.s32.totalorder %s19, 0
      %p65 = por %p63, %p64
      %p66 = scmp.ne.s32.totalorder %s55, %s58
      %p67 = scmp.eq.s32.totalorder %s24, 1
      %p68 = por %p66, %p67
      %p69 = scmp.ne.s32.totalorder %s58, %s59
      %p70 = scmp.eq.s32.totalorder %s24, 0
      %p71 = por %p69, %p70
      %p72 = scmp.ne.s32.totalorder %s58, %s59
      %p73 = scmp.eq.s32.totalorder %s25, 1
      %p74 = por %p72, %p73
      %p76 = scmp.ne.s32.totalorder %s59, %s75
      %p77 = scmp.eq.s32.totalorder %s25, 0
      %p78 = por %p76, %p77
      %s80 = sadd.s32 %s79, 1
      %p83 = scmp.eq.s32.totalorder %s19, 1
      %p84 = scmp.ne.s32.totalorder %s79, %s81
      %p85 = scmp.eq.s32.totalorder %s19, 0
      %p86 = por %p84, %p85
      %p87 = scmp.ne.s32.totalorder %s79, %s81
      %p88 = scmp.eq.s32.totalorder %s24, 1
      %p89 = por %p87, %p88
      %p90 = scmp.ne.s32.totalorder %s81, %s82
      %p91 = scmp.eq.s32.totalorder %s24, 0
      %p92 = por %p90, %p91
      %p93 = scmp.ne.s32.totalorder %s81, %s82
      %p94 = scmp.eq.s32.totalorder %s25, 1
      %p95 = por %p93, %p94
      %p97 = scmp.ne.s32.totalorder %s82, %s96
      %p98 = scmp.eq.s32.totalorder %s25, 0
      %p99 = por %p97, %p98
      %s100 = ssub.s32 %s19, %s26
      %p101 = scmp.eq.s32.totalorder %s100, 0
      %s103 = sadd.s32 %s102, 1
      %s104 = scalar_select %p101, %s102, %s103
      %p107 = pneg %p101
      %p108 = scmp.eq.s32.totalorder %s19, 1
      %p109 = por %p107, %p108
      %p110 = scmp.ne.s32.totalorder %s102, %s105
      %p111 = scmp.eq.s32.totalorder %s19, 0
      %p112 = por %p110, %p111
      %p113 = scmp.ne.s32.totalorder %s102, %s105
      %p114 = scmp.eq.s32.totalorder %s24, 1
      %p115 = por %p113, %p114
      %p116 = scmp.ne.s32.totalorder %s105, %s106
      %p117 = scmp.eq.s32.totalorder %s24, 0
      %p118 = por %p116, %p117
      %p119 = scmp.ne.s32.totalorder %s105, %s106
      %p120 = scmp.eq.s32.totalorder %s25, 1
      %p121 = por %p119, %p120
      %p123 = scmp.ne.s32.totalorder %s106, %s122
      %p124 = scmp.eq.s32.totalorder %s25, 0
      %p125 = por %p123, %p124
      %s126 = ssub.s32 %s19, %s26
      %p127 = scmp.eq.s32.totalorder %s126, 0
      %s129 = sadd.s32 %s128, 1
      %s130 = scalar_select %p127, %s128, %s129
      %p133 = pneg %p127
      %p134 = scmp.eq.s32.totalorder %s19, 1
      %p135 = por %p133, %p134
      %p136 = scmp.ne.s32.totalorder %s128, %s131
      %p137 = scmp.eq.s32.totalorder %s19, 0
      %p138 = por %p136, %p137
      %p139 = scmp.ne.s32.totalorder %s128, %s131
      %p140 = scmp.eq.s32.totalorder %s24, 1
      %p141 = por %p139, %p140
      %p142 = scmp.ne.s32.totalorder %s131, %s132
      %p143 = scmp.eq.s32.totalorder %s24, 0
      %p144 = por %p142, %p143
      %p145 = scmp.ne.s32.totalorder %s131, %s132
      %p146 = scmp.eq.s32.totalorder %s25, 1
      %p147 = por %p145, %p146
      %p149 = scmp.ne.s32.totalorder %s132, %s148
      %p150 = scmp.eq.s32.totalorder %s25, 0
      %p151 = por %p149, %p150
      %s152 = ssub.s32 %s19, %s26
      %p153 = scmp.eq.s32.totalorder %s152, 0
      %s155 = sadd.s32 %s154, 1
      %s156 = scalar_select %p153, %s154, %s155
      %p159 = pneg %p153
      %p160 = scmp.eq.s32.totalorder %s19, 1
      %p161 = por %p159, %p160
      %p162 = scmp.ne.s32.totalorder %s154, %s157
      %p163 = scmp.eq.s32.totalorder %s19, 0
      %p164 = por %p162, %p163
      %p165 = scmp.ne.s32.totalorder %s154, %s157
      %p166 = scmp.eq.s32.totalorder %s24, 1
      %p167 = por %p165, %p166
      %p168 = scmp.ne.s32.totalorder %s157, %s158
      %p169 = scmp.eq.s32.totalorder %s24, 0
      %p170 = por %p168, %p169
      %p171 = scmp.ne.s32.totalorder %s157, %s158
      %p172 = scmp.eq.s32.totalorder %s25, 1
      %p173 = por %p171, %p172
      %p175 = scmp.ne.s32.totalorder %s158, %s174
      %p176 = scmp.eq.s32.totalorder %s25, 0
      %p177 = por %p175, %p176
      %s178 = ssub.s32 %s19, %s26
      %p179 = scmp.eq.s32.totalorder %s178, 0
      %s181 = sadd.s32 %s180, 1
      %s182 = scalar_select %p179, %s180, %s181
      %p185 = pneg %p179
      %p186 = scmp.eq.s32.totalorder %s19, 1
      %p187 = por %p185, %p186
      %p188 = scmp.ne.s32.totalorder %s180, %s183
      %p189 = scmp.eq.s32.totalorder %s19, 0
      %p190 = por %p188, %p189
      %p191 = scmp.ne.s32.totalorder %s180, %s183
      %p192 = scmp.eq.s32.totalorder %s24, 1
      %p193 = por %p191, %p192
      %p194 = scmp.ne.s32.totalorder %s183, %s184
      %p195 = scmp.eq.s32.totalorder %s24, 0
      %p196 = por %p194, %p195
      %p197 = scmp.ne.s32.totalorder %s183, %s184
      %p198 = scmp.eq.s32.totalorder %s25, 1
      %p199 = por %p197, %p198
      %p201 = scmp.ne.s32.totalorder %s184, %s200
      %p202 = scmp.eq.s32.totalorder %s25, 0
      %p203 = por %p201, %p202
      %p204 = scmp.le.s32.totalorder 1, %s19
      %p205 = scmp.lt.s32.totalorder %s19, 3
      %p206 = pnand %p204, %p205
      %p207 = pneg %p206
      // Predicated region
      $region9: #{tpu_custom_call.1} parent=5 // pred_check
        _
      $region10: #{tpu_custom_call.1} parent=5 // pred_check_branch
        %209 = sbr.rel (%p206) target = $region12
      $region11: #{tpu_custom_call.1} parent=5 // pred_region
        %s210 = ssub.s32 %s19, 1
        // Predicated region
        $region13: #{tpu_custom_call.1} parent=11 // pred_check
          %p211 = pneg %p92
        $region14: #{tpu_custom_call.1} parent=11 // pred_check_branch
          %213 = sbr.rel (%p211) target = $region16
        $region15: #{tpu_custom_call.1} parent=11 // pred_region
          _
        $region16: #{tpu_custom_call.1} parent=11 // pred_fallthru
          _
      $region12: #{tpu_custom_call.1} parent=5 // pred_fallthru
        _
      %p214 = scmp.lt.s32.totalorder %s19, 2
      // Predicated region
      $region17: #{tpu_custom_call.1} parent=5 // pred_check
        %p215 = pneg %p214
      $region18: #{tpu_custom_call.1} parent=5 // pred_check_branch
        %217 = sbr.rel (%p215) target = $region20
      $region19: #{tpu_custom_call.1} parent=5 // pred_region
        // Predicated region
        $region21: #{tpu_custom_call.1} parent=19 // pred_check
          %p218 = pneg %p39
        $region22: #{tpu_custom_call.1} parent=19 // pred_check_branch
          %220 = sbr.rel (%p218) target = $region24
        $region23: #{tpu_custom_call.1} parent=19 // pred_region
          %s221 = sand.u32 %s29, 1
          %s222 = scalar_lea.sflag [#allocation3], %s221
          %s223 = sand.u32 %s29, 1
          %s224 = smul.addr %s223, 32
          %s225 = scalar_lea.vmem [#allocation2], %s224
          %s226 = smul.u32 4, %s19
          %s228 = ssub.s32 512, 512
          %229 = vsyncadd %s222, %s228
          %s230 = smul.addr %s226, 128
          %s231 = scalar_lea.hbm %s0, %s230
          %s233 = sshll.u32 %s225, 4
          %s234 = int_to_ptr.vmem [resolvable:$true] %s233
          %236 = dma.hbm_to_vmem [thread:$0]  %s231, 512, %s234, %s222
        $region24: #{tpu_custom_call.1} parent=19 // pred_fallthru
          _
        // Predicated region
        $region25: #{tpu_custom_call.1} parent=19 // pred_check
          %p237 = pneg %p65
        $region26: #{tpu_custom_call.1} parent=19 // pred_check_branch
          %239 = sbr.rel (%p237) target = $region28
        $region27: #{tpu_custom_call.1} parent=19 // pred_region
          %s240 = smul.u32 4, %s19
          %p241 = scmp.lt.s32.totalorder %s240, 7
          %s242 = scalar_select %p241, %s240, 7
          %s243 = scalar_lea.vmem %s1, %s242
          %s244 = smul.u32 4, %s19
        $region28: #{tpu_custom_call.1} parent=19 // pred_fallthru
          _
      $region20: #{tpu_custom_call.1} parent=5 // pred_fallthru
        _
      %p245 = scmp.le.s32.totalorder 1, %s19
      %p246 = scmp.lt.s32.totalorder %s19, 3
      %p247 = pnand %p245, %p246
      %p248 = pneg %p247
      // Predicated region
      $region29: #{tpu_custom_call.1} parent=5 // pred_check
        _
      $region30: #{tpu_custom_call.1} parent=5 // pred_check_branch
        %250 = sbr.rel (%p247) target = $region32
      $region31: #{tpu_custom_call.1} parent=5 // pred_region
        %s251 = ssub.s32 %s19, 1
        %s252 = sand.u32 %s32, 1
        %s253 = scalar_lea.sflag [#allocation3], %s252
        %s254 = sand.u32 %s32, 1
        %s255 = smul.addr %s254, 32
        %s256 = scalar_lea.vmem [#allocation2], %s255
        // Predicated region
        $region33: #{tpu_custom_call.1} parent=31 // pred_check
          %p257 = pneg %p45
        $region34: #{tpu_custom_call.1} parent=31 // pred_check_branch
          %259 = sbr.rel (%p257) target = $region36
        $region35: #{tpu_custom_call.1} parent=31 // pred_region
          %260 = dma.done %s253, 512
        $region36: #{tpu_custom_call.1} parent=31 // pred_fallthru
          _
        %s261 = sand.u32 %s32, 1
        %s262 = scalar_lea.sflag [#allocation3], %s261
        %s263 = sand.u32 %s32, 1
        %s264 = smul.addr %s263, 32
        %s265 = scalar_lea.vmem [#allocation2], %s264
        %p266 = pneg %p45
        %p267 = pneg %p42
        %s268 = smul.u32 4, %s24
        %p269 = scmp.lt.s32.totalorder %s268, 7
        %s270 = scalar_select %p269, %s268, 7
        %s271 = scalar_lea.vmem %s1, %s270
        %p272 = pneg %p71
        %p273 = pneg %p68
        %p274 = pneg %p92
        %p275 = pneg %p89
        %p276 = pneg %p118
        %p277 = pneg %p115
        %s278 = sand.u32 %s105, 1
        %s279 = scalar_lea.sflag [#allocation4], %s278
        %s280 = sand.u32 %s105, 1
        %s281 = smul.addr %s280, 32
        %s282 = scalar_lea.vmem [#allocation5], %s281
        %p283 = pneg %p144
        %p284 = pneg %p141
        %p285 = scmp.lt.s32.totalorder %s24, 1
        %s286 = scalar_select %p285, %s24, 1
        %s287 = smul.addr %s286, 8
        %s288 = scalar_lea.vmem %s4, %s287
        %p289 = pneg %p170
        %p290 = pneg %p167
        %p291 = scmp.lt.s32.totalorder %s24, 1
        %s292 = scalar_select %p291, %s24, 1
        %s293 = scalar_lea.vmem %s5, %s292
        %p294 = pneg %p196
        %p295 = pneg %p193
        %p296 = scmp.lt.s32.totalorder %s24, 1
        %s297 = scalar_select %p296, %s24, 1
        %s298 = scalar_lea.vmem %s6, %s297
        %s299 = smul.u32 4, %s24
        %s300 = smul.u32 4, %s24
        %p301 = scmp.lt.s32.totalorder %s300, 7
        %s302 = scalar_select %p301, %s300, 7
        %s303 = scalar_lea.vmem %s1, %s302
        %s304 = smul.u32 4, %s24
        %s305 = smul.u32 4, %s24
        %p306 = scmp.lt.s32.totalorder %s24, 1
        %s307 = scalar_select %p306, %s24, 1
        %s308 = smul.addr %s307, 8
        %s309 = scalar_lea.vmem %s4, %s308
        %p310 = scmp.lt.s32.totalorder %s24, 1
        %s311 = scalar_select %p310, %s24, 1
        %s312 = scalar_lea.vmem %s5, %s311
        %p313 = scmp.lt.s32.totalorder %s24, 1
        %s314 = scalar_select %p313, %s24, 1
        %s315 = scalar_lea.vmem %s6, %s314
        %v316 = vld [vmem:[%s256] sm:$0xff]
        %v317 = vld [vmem:[%s256 + $0x8] sm:$0xff]
        %v318 = vld [vmem:[%s256 + $0x10] sm:$0xff]
        %v319 = vld [vmem:[%s256 + $0x18] sm:$0xff]
        %v320 = vld [vmem:[%s303] sm:$0xf]
        %v321 = vld [vmem:[%s2] sm:$0xff]
        %v322 = vlaneseq
        %v323 = vshrl.u32 %v322, 7
        %v324 = vlaneseq
        %v325 = vshrl.u32 %v324, 7
        %v326 = vsub.s32 0, %v325
        %v327 = vrot.slane %v320, %v326
        %v328 = vlaneseq
        %v329 = vshrl.u32 %v328, 7
        %v330 = vsub.s32 1, %v329
        %v331 = vrot.slane %v320, %v330
        %v332 = vlaneseq
        %v333 = vshrl.u32 %v332, 7
        %v334 = vsub.s32 2, %v333
        %v335 = vrot.slane %v320, %v334
        %v336 = vlaneseq
        %v337 = vshrl.u32 %v336, 7
        %v338 = vsub.s32 3, %v337
        %v339 = vrot.slane %v320, %v338
        %vm340 = vcmp.eq.s32.totalorder %v327, %v323
        %vm341 = vcmp.eq.s32.totalorder %v331, %v323
        %vm342 = vcmp.eq.s32.totalorder %v335, %v323
        %vm343 = vcmp.eq.s32.totalorder %v339, %v323
        %v344 = vsel %vm340, 1, 0
        %v345 = vsel %vm341, 1, 0
        %v346 = vsel %vm342, 1, 0
        %v347 = vsel %vm343, 1, 0
        %v348 = vcvt.s32.f32 %v344
        %v349 = vcvt.s32.f32 %v345
        %v350 = vcvt.s32.f32 %v346
        %v351 = vcvt.s32.f32 %v347
        %vm352 = vcmp.ne.s32.totalorder %v320, 0
        %v353 = vsel %vm352, 1, 0
        %v354 = vcvt.s32.f32 %v353
        %v355 = vrot.slane %v316, 4
        %v356 = vmax.f32 %v316, %v355
        %v357 = vrot.slane %v356, 2
        %v358 = vmax.f32 %v356, %v357
        %v359 = vrot.slane %v358, 1
        %v360 = vmax.f32 %v358, %v359
        %v361 = vrot.slane %v317, 4
        %v362 = vmax.f32 %v317, %v361
        %v363 = vrot.slane %v362, 2
        %v364 = vmax.f32 %v362, %v363
        %v365 = vrot.slane %v364, 1
        %v366 = vmax.f32 %v364, %v365
        %v367 = vrot.slane %v318, 4
        %v368 = vmax.f32 %v318, %v367
        %v369 = vrot.slane %v368, 2
        %v370 = vmax.f32 %v368, %v369
        %v371 = vrot.slane %v370, 1
        %v372 = vmax.f32 %v370, %v371
        %v373 = vrot.slane %v319, 4
        %v374 = vmax.f32 %v319, %v373
        %v375 = vrot.slane %v374, 2
        %v376 = vmax.f32 %v374, %v375
        %v377 = vrot.slane %v376, 1
        %v378 = vmax.f32 %v376, %v377
        %v379 = vsub.f32 %v316, %v360
        %v380 = vsub.f32 %v317, %v366
        %v381 = vsub.f32 %v318, %v372
        %v382 = vsub.f32 %v319, %v378
        %v383 = vmul.f32 %v379, 1.442695
        %v384 = vpow.pop %v383
        %v385 = vmul.f32 %v380, 1.442695
        %v386 = vpow.pop %v385
        %v387 = vmul.f32 %v381, 1.442695
        %v388 = vpow.pop %v387
        %v389 = vmul.f32 %v382, 1.442695
        %v390 = vpow.pop %v389
        %v391 = vrot.slane %v384, 4
        %v392 = vadd.f32 %v384, %v391
        %v393 = vrot.slane %v392, 2
        %v394 = vadd.f32 %v392, %v393
        %v395 = vrot.slane %v394, 1
        %v396 = vadd.f32 %v394, %v395
        %v397 = vrot.slane %v386, 4
        %v398 = vadd.f32 %v386, %v397
        %v399 = vrot.slane %v398, 2
        %v400 = vadd.f32 %v398, %v399
        %v401 = vrot.slane %v400, 1
        %v402 = vadd.f32 %v400, %v401
        %v403 = vrot.slane %v388, 4
        %v404 = vadd.f32 %v388, %v403
        %v405 = vrot.slane %v404, 2
        %v406 = vadd.f32 %v404, %v405
        %v407 = vrot.slane %v406, 1
        %v408 = vadd.f32 %v406, %v407
        %v409 = vrot.slane %v390, 4
        %v410 = vadd.f32 %v390, %v409
        %v411 = vrot.slane %v410, 2
        %v412 = vadd.f32 %v410, %v411
        %v413 = vrot.slane %v412, 1
        %v414 = vadd.f32 %v412, %v413
        %v415 = vrcp.pop %v396
        %v416 = vrcp.pop %v402
        %v417 = vrcp.pop %v408
        %v418 = vrcp.pop %v414
        %v419 = vmul.f32 %v384, %v415
        %v420 = vmul.f32 %v386, %v416
        %v421 = vmul.f32 %v388, %v417
        %v422 = vmul.f32 %v390, %v418
        %v423 = vlog2.pop %v396
        %v424 = vmul.f32 %v423, 0.6931472
        %v425 = vlog2.pop %v402
        %v426 = vmul.f32 %v425, 0.6931472
        %v427 = vlog2.pop %v408
        %v428 = vmul.f32 %v427, 0.6931472
        %v429 = vlog2.pop %v414
        %v430 = vmul.f32 %v429, 0.6931472
        %v431 = vadd.f32 %v424, %v360
        %v432 = vadd.f32 %v426, %v366
        %v433 = vadd.f32 %v428, %v372
        %v434 = vadd.f32 %v430, %v378
        %v435 = vmul.f32 %v348, %v316
        %v436 = vmul.f32 %v349, %v317
        %v437 = vmul.f32 %v350, %v318
        %v438 = vmul.f32 %v351, %v319
        %v439 = vrot.slane %v435, 4
        %v440 = vadd.f32 %v435, %v439
        %v441 = vrot.slane %v440, 2
        %v442 = vadd.f32 %v440, %v441
        %v443 = vrot.slane %v442, 1
        %v444 = vadd.f32 %v442, %v443
        %v445 = vrot.slane %v436, 4
        %v446 = vadd.f32 %v436, %v445
        %v447 = vrot.slane %v446, 2
        %v448 = vadd.f32 %v446, %v447
        %v449 = vrot.slane %v448, 1
        %v450 = vadd.f32 %v448, %v449
        %v451 = vrot.slane %v437, 4
        %v452 = vadd.f32 %v437, %v451
        %v453 = vrot.slane %v452, 2
        %v454 = vadd.f32 %v452, %v453
        %v455 = vrot.slane %v454, 1
        %v456 = vadd.f32 %v454, %v455
        %v457 = vrot.slane %v438, 4
        %v458 = vadd.f32 %v438, %v457
        %v459 = vrot.slane %v458, 2
        %v460 = vadd.f32 %v458, %v459
        %v461 = vrot.slane %v460, 1
        %v462 = vadd.f32 %v460, %v461
        %v463 = vsub.f32 %v431, %v444
        %v464 = vsub.f32 %v432, %v450
        %v465 = vsub.f32 %v433, %v456
        %v466 = vsub.f32 %v434, %v462
        %468 = vset.pattern.permute.xlu0 0
        %469 = vperm.xlu0 %468, %v321
        %v470 = vpop.permute.xlu0 %469
        %v472 = vmul.f32 %v348, %v470
        %v473 = vmul.f32 %v349, %v470
        %v474 = vmul.f32 %v350, %v470
        %v475 = vmul.f32 %v351, %v470
        %v476 = vrot.slane %v472, 4
        %v477 = vadd.f32 %v472, %v476
        %v478 = vrot.slane %v477, 2
        %v479 = vadd.f32 %v477, %v478
        %v480 = vrot.slane %v479, 1
        %v481 = vadd.f32 %v479, %v480
        %v482 = vrot.slane %v473, 4
        %v483 = vadd.f32 %v473, %v482
        %v484 = vrot.slane %v483, 2
        %v485 = vadd.f32 %v483, %v484
        %v486 = vrot.slane %v485, 1
        %v487 = vadd.f32 %v485, %v486
        %v488 = vrot.slane %v474, 4
        %v489 = vadd.f32 %v474, %v488
        %v490 = vrot.slane %v489, 2
        %v491 = vadd.f32 %v489, %v490
        %v492 = vrot.slane %v491, 1
        %v493 = vadd.f32 %v491, %v492
        %v494 = vrot.slane %v475, 4
        %v495 = vadd.f32 %v475, %v494
        %v496 = vrot.slane %v495, 2
        %v497 = vadd.f32 %v495, %v496
        %v498 = vrot.slane %v497, 1
        %v499 = vadd.f32 %v497, %v498
        %v501 = vlaneseq
        %v502 = vshrl.u32 %v501, 7
        %v503 = vsub.s32 0, %v502
        %v504 = vrot.slane %v354, %v503
        %v505 = vlaneseq
        %v506 = vshrl.u32 %v505, 7
        %v507 = vsub.s32 1, %v506
        %v508 = vrot.slane %v354, %v507
        %v509 = vlaneseq
        %v510 = vshrl.u32 %v509, 7
        %v511 = vsub.s32 2, %v510
        %v512 = vrot.slane %v354, %v511
        %v513 = vlaneseq
        %v514 = vshrl.u32 %v513, 7
        %v515 = vsub.s32 3, %v514
        %v516 = vrot.slane %v354, %v515
        %v521 = vmul.f32 %v481, %v504
        %v522 = vmul.f32 %v487, %v508
        %v523 = vmul.f32 %v493, %v512
        %v524 = vmul.f32 %v499, %v516
        %v525 = vmul.f32 %v521, %v463
        %v526 = vmul.f32 %v522, %v464
        %v527 = vmul.f32 %v523, %v465
        %v528 = vmul.f32 %v524, %v466
        %vm529 = vcmask 1040384
        %v530 = vsel %vm529, %v525, 0.0
        %v531 = vsel %vm529, %v526, 0.0
        %v532 = vadd.f32 %v530, %v531
        %v533 = vsel %vm529, %v527, 0.0
        %v534 = vadd.f32 %v532, %v533
        %v535 = vsel %vm529, %v528, 0.0
        %v536 = vadd.f32 %v534, %v535
        %537 = vadd.xlane.f32.xlu0 %v536
        %v538 = vpop.xlane.xlu0 %537
        %v539 = vrot.slane %v538, 4
        %v540 = vadd.f32 %v538, %v539
        %v541 = vrot.slane %v540, 2
        %v542 = vadd.f32 %v540, %v541
        %v543 = vrot.slane %v542, 1
        %v544 = vadd.f32 %v542, %v543
        %s545 = vtos %v544
        %v546 = vstv %s545
        %vm547 = vcmask 0
        %548 = vst.msk [vmem:[%s312] sm:$0x1] %vm547, %v546
        %v549 = vsel %vm529, %v521, 0.0
        %v550 = vsel %vm529, %v522, 0.0
        %v551 = vadd.f32 %v549, %v550
        %v552 = vsel %vm529, %v523, 0.0
        %v553 = vadd.f32 %v551, %v552
        %v554 = vsel %vm529, %v524, 0.0
        %v555 = vadd.f32 %v553, %v554
        %556 = vadd.xlane.f32.xlu0 %v555
        %v557 = vpop.xlane.xlu0 %556
        %v558 = vrot.slane %v557, 4
        %v559 = vadd.f32 %v557, %v558
        %v560 = vrot.slane %v559, 2
        %v561 = vadd.f32 %v559, %v560
        %v562 = vrot.slane %v561, 1
        %v563 = vadd.f32 %v561, %v562
        %s564 = vtos %v563
        %v565 = vstv %s564
        %566 = vst.msk [vmem:[%s315] sm:$0x1] %vm547, %v565
        %v567 = vmul.f32 %v348, %v504
        %v568 = vmul.f32 %v349, %v508
        %v569 = vmul.f32 %v350, %v512
        %v570 = vmul.f32 %v351, %v516
        %v571 = vsub.f32 %v567, %v419
        %v572 = vsub.f32 %v568, %v420
        %v573 = vsub.f32 %v569, %v421
        %v574 = vsub.f32 %v570, %v422
        %v575 = vand.u32 2147483647, %v571
        %v576 = vand.u32 2147483647, %v572
        %v577 = vand.u32 2147483647, %v573
        %v578 = vand.u32 2147483647, %v574
        %v579 = vmul.f32 %v575, %v504
        %v580 = vmul.f32 %v576, %v508
        %v581 = vmul.f32 %v577, %v512
        %v582 = vmul.f32 %v578, %v516
        %v583 = vadd.f32 %v567, %v568
        %v584 = vadd.f32 %v583, %v569
        %v585 = vadd.f32 %v584, %v570
        %586 = vadd.xlane.f32.xlu0 %v585
        %v587 = vpop.xlane.xlu0 %586
        %vm588 = vcmask 7168
        %589 = vst.msk [vmem:[%s309] sm:$0xff] %vm588, %v587
        %v594 = vand.u32 %v579, 4294901760
        %v595 = vand.u32 %v580, 4294901760
        %v596 = vand.u32 %v581, 4294901760
        %v597 = vand.u32 %v582, 4294901760
        %vm598 = vcmp.gt.f32.partialorder %v567, 0.5
        %vm599 = vcmp.gt.f32.partialorder %v568, 0.5
        %vm600 = vcmp.gt.f32.partialorder %v569, 0.5
        %vm601 = vcmp.gt.f32.partialorder %v570, 0.5
        %v602 = vsel %vm598, 16256, 0
        %v603 = vsel %vm599, 16256, 0
        %v604 = vsel %vm600, 16256, 0
        %v605 = vsel %vm601, 16256, 0
        %v606 = vor.u32 %v594, %v602
        %v607 = vor.u32 %v595, %v603
        %v608 = vor.u32 %v596, %v604
        %v609 = vor.u32 %v597, %v605
        %v610 = vxor.u32 %v606, 4294967295
        %v611 = vxor.u32 %v607, 4294967295
        %v612 = vxor.u32 %v608, 4294967295
        %v613 = vxor.u32 %v609, 4294967295
        %614 = vst [vmem:[%s282] sm:$0xff] %v610
        %615 = vst [vmem:[%s282 + $0x8] sm:$0xff] %v611
        %616 = vst [vmem:[%s282 + $0x10] sm:$0xff] %v612
        %617 = vst [vmem:[%s282 + $0x18] sm:$0xff] %v613
        %s618 = sand.u32 %s105, 1
        %s619 = scalar_lea.sflag [#allocation4], %s618
        %s620 = sand.u32 %s105, 1
        %s621 = smul.addr %s620, 32
        %s622 = scalar_lea.vmem [#allocation5], %s621
        %p623 = scmp.lt.s32.totalorder %s24, 1
        %s624 = scalar_select %p623, %s24, 1
        %s625 = smul.addr %s624, 8
        %s626 = scalar_lea.vmem %s4, %s625
        %p627 = scmp.lt.s32.totalorder %s24, 1
        %s628 = scalar_select %p627, %s24, 1
        %s629 = scalar_lea.vmem %s5, %s628
        %p630 = scmp.lt.s32.totalorder %s24, 1
        %s631 = scalar_select %p630, %s24, 1
        %s632 = scalar_lea.vmem %s6, %s631
        // Predicated region
        $region37: #{tpu_custom_call.1} parent=31 // pred_check
          %p633 = pneg %p115
        $region38: #{tpu_custom_call.1} parent=31 // pred_check_branch
          %635 = sbr.rel (%p633) target = $region40
        $region39: #{tpu_custom_call.1} parent=31 // pred_region
          %s636 = smul.u32 4, %s24
          %s638 = ssub.s32 512, 512
          %639 = vsyncadd %s619, %s638
          %s640 = smul.addr %s636, 128
          %s641 = scalar_lea.hbm %s3, %s640
          %s643 = sshll.u32 %s622, 4
          %s644 = int_to_ptr.vmem [resolvable:$true] %s643
          %646 = dma.vmem_to_hbm [thread:$0]  %s644, 512, %s641, %s619
        $region40: #{tpu_custom_call.1} parent=31 // pred_fallthru
          _
        // Predicated region
        $region41: #{tpu_custom_call.1} parent=31 // pred_check
          %p647 = pneg %p141
        $region42: #{tpu_custom_call.1} parent=31 // pred_check_branch
          %649 = sbr.rel (%p647) target = $region44
        $region43: #{tpu_custom_call.1} parent=31 // pred_region
          _
        $region44: #{tpu_custom_call.1} parent=31 // pred_fallthru
          _
        // Predicated region
        $region45: #{tpu_custom_call.1} parent=31 // pred_check
          %p650 = pneg %p167
        $region46: #{tpu_custom_call.1} parent=31 // pred_check_branch
          %652 = sbr.rel (%p650) target = $region48
        $region47: #{tpu_custom_call.1} parent=31 // pred_region
          _
        $region48: #{tpu_custom_call.1} parent=31 // pred_fallthru
          _
        // Predicated region
        $region49: #{tpu_custom_call.1} parent=31 // pred_check
          %p653 = pneg %p193
        $region50: #{tpu_custom_call.1} parent=31 // pred_check_branch
          %655 = sbr.rel (%p653) target = $region52
        $region51: #{tpu_custom_call.1} parent=31 // pred_region
          _
        $region52: #{tpu_custom_call.1} parent=31 // pred_fallthru
          _
      $region32: #{tpu_custom_call.1} parent=5 // pred_fallthru
        _
      %p656 = scmp.le.s32.totalorder 2, %s19
      // Predicated region
      $region53: #{tpu_custom_call.1} parent=5 // pred_check
        %p657 = pneg %p656
      $region54: #{tpu_custom_call.1} parent=5 // pred_check_branch
        %659 = sbr.rel (%p657) target = $region56
      $region55: #{tpu_custom_call.1} parent=5 // pred_region
        %s660 = ssub.s32 %s19, 2
        // Predicated region
        $region57: #{tpu_custom_call.1} parent=55 // pred_check
          %p661 = pneg %p121
        $region58: #{tpu_custom_call.1} parent=55 // pred_check_branch
          %663 = sbr.rel (%p661) target = $region60
        $region59: #{tpu_custom_call.1} parent=55 // pred_region
          %s664 = sand.u32 %s106, 1
          %s665 = scalar_lea.sflag [#allocation4], %s664
          %s666 = sand.u32 %s106, 1
          %s667 = smul.addr %s666, 32
          %s668 = scalar_lea.vmem [#allocation5], %s667
          %669 = dma.done %s665, 512
        $region60: #{tpu_custom_call.1} parent=55 // pred_fallthru
          _
        // Predicated region
        $region61: #{tpu_custom_call.1} parent=55 // pred_check
          %p670 = pneg %p147
        $region62: #{tpu_custom_call.1} parent=55 // pred_check_branch
          %672 = sbr.rel (%p670) target = $region64
        $region63: #{tpu_custom_call.1} parent=55 // pred_region
          %p673 = scmp.lt.s32.totalorder %s25, 1
          %s674 = scalar_select %p673, %s25, 1
          %s675 = smul.addr %s674, 8
          %s676 = scalar_lea.vmem %s4, %s675
        $region64: #{tpu_custom_call.1} parent=55 // pred_fallthru
          _
        // Predicated region
        $region65: #{tpu_custom_call.1} parent=55 // pred_check
          %p677 = pneg %p173
        $region66: #{tpu_custom_call.1} parent=55 // pred_check_branch
          %679 = sbr.rel (%p677) target = $region68
        $region67: #{tpu_custom_call.1} parent=55 // pred_region
          %p680 = scmp.lt.s32.totalorder %s25, 1
          %s681 = scalar_select %p680, %s25, 1
          %s682 = scalar_lea.vmem %s5, %s681
        $region68: #{tpu_custom_call.1} parent=55 // pred_fallthru
          _
        // Predicated region
        $region69: #{tpu_custom_call.1} parent=55 // pred_check
          %p683 = pneg %p199
        $region70: #{tpu_custom_call.1} parent=55 // pred_check_branch
          %685 = sbr.rel (%p683) target = $region72
        $region71: #{tpu_custom_call.1} parent=55 // pred_region
          %p686 = scmp.lt.s32.totalorder %s25, 1
          %s687 = scalar_select %p686, %s25, 1
          %s688 = scalar_lea.vmem %s6, %s687
        $region72: #{tpu_custom_call.1} parent=55 // pred_fallthru
          _
      $region56: #{tpu_custom_call.1} parent=5 // pred_fallthru
        _
    $region6: #{tpu_custom_call.1} parent=1 // loop_footer
      %s23 = sadd.s32 1, %s19
    $region7: #{tpu_custom_call.1} parent=1 // loop_footer_branch
      %18 = sbr.rel target = $region3
    $region8: #{tpu_custom_call.1} parent=1 // loop_exit
      _
    %689 = vsyncpa [#allocation3], 1
    %s690 = scalar_lea.sflag [#allocation3], 1
    %691 = vsyncpa %s690, 1
    %692 = vsyncpa [#allocation4], 1
    %s693 = scalar_lea.sflag [#allocation4], 1
    %694 = vsyncpa %s693, 1

</llo_original>
